<compile_context>
chip_gen: v7x
topology: tpu7x:2x2x1
jax: 0.10.0
libtpu: 0.0.40
codegen_flags: <defaults>
</compile_context>

<pallas_src>
import jax
import jax.numpy as jnp
from jax import lax
from jax.experimental import pallas as pl
from jax.experimental.pallas import tpu as pltpu


def _flip_matmul_kernel(x_ref, perm_ref, o_ref):
    # (tile_r, L) @ (L, L) 0/1-permutation -> per-row lane reversal (exact).
    o_ref[...] = jnp.dot(
        x_ref[...], perm_ref[...], preferred_element_type=jnp.float32
    ).astype(o_ref.dtype)


def _hflip_image(img_nchw, *, max_tile_rows=1024):
    """Horizontally flip an NCHW image (reverse the last, W, axis) with Pallas."""
    N, C, H, W = img_nchw.shape
    dtype = img_nchw.dtype
    R = N * C * H

    anti_eye = lambda n: jnp.flip(jnp.eye(n, dtype=dtype), axis=0)

    if W <= 128 and 128 % W == 0 and R % (128 // W) == 0:
        # Lane-dense packing: K image rows per 128-wide lane-row; flip each
        # W-chunk with a block-diagonal anti-identity.
        K = 128 // W
        rows, lane, n_lane_tiles, reverse_tiles = R // K, 128, 1, False
        perm = jnp.kron(jnp.eye(K, dtype=dtype), anti_eye(W))
        x2d = img_nchw.reshape(rows, lane)
    elif W % 128 == 0:
        # Flip inside each 128-lane tile; reverse tile order via the output
        # index_map so the MXU operand stays a fixed 128x128 anti-identity.
        rows, lane, n_lane_tiles, reverse_tiles = R, 128, W // 128, True
        perm = anti_eye(128)
        x2d = img_nchw.reshape(R, W)
    else:
        # Generic fallback: W x W anti-identity (output not lane-dense, but
        # still row-tiled and pipelined).
        rows, lane, n_lane_tiles, reverse_tiles = R, W, 1, False
        perm = anti_eye(W)
        x2d = img_nchw.reshape(R, W)

    tile_r = rows if rows <= max_tile_rows else max_tile_rows
    grid = (pl.cdiv(rows, tile_r), n_lane_tiles)

    if reverse_tiles:
        out_idx = lambda i, j: (i, n_lane_tiles - 1 - j)
    else:
        out_idx = lambda i, j: (i, j)

    out2d = pl.pallas_call(
        _flip_matmul_kernel,
        out_shape=jax.ShapeDtypeStruct(x2d.shape, dtype),
        grid=grid,
        in_specs=[
            pl.BlockSpec((tile_r, lane), lambda i, j: (i, j)),   # image tile
            pl.BlockSpec((lane, lane), lambda i, j: (0, 0)),     # permutation
        ],
        out_specs=pl.BlockSpec((tile_r, lane), out_idx),
        compiler_params=pltpu.CompilerParams(
            dimension_semantics=("parallel", "parallel")
        ),
    )(x2d, perm)

    return out2d.reshape(N, C, H, W)


def horizontal_flip(img_nchw, bboxes, p=0.5, key=None):
    """Pallas/JAX equivalent of MyHorizontalFlip.forward.

    img_nchw: (N, C, H, W) float image.
    bboxes:   (B, 5) float rows of [class_prob, x, y, w, h].
    Returns (img, bboxes, flag); `flag` is a (traced-safe) bool scalar array
    indicating whether the flip was applied.
    """
    if key is None:
        key = jax.random.PRNGKey(0)
    flag = jax.random.uniform(key, ()) < p  # torch.rand(1) < self.p

    def _do_flip(img, boxes):
        flipped_img = _hflip_image(img)
        # x <- 1 - x on column 1 (matches the PyTorch reference's convention).
        flipped_boxes = boxes.at[:, 1].set(1.0 - boxes[:, 1])
        return flipped_img, flipped_boxes

    def _identity(img, boxes):
        return img, boxes

    out_img, out_boxes = lax.cond(flag, _do_flip, _identity, img_nchw, bboxes)
    return out_img, out_boxes, flag


if __name__ == "__main__":
    key = jax.random.PRNGKey(0)
    k_img, k_box, k_flip = jax.random.split(key, 3)

    N, C, H, W = 2, 4, 16, 16
    img = jax.random.normal(k_img, (N, C, H, W), dtype=jnp.float32)
    # bboxes: [class_prob, x, y, w, h], normalized coords in [0, 1]
    bboxes = jax.random.uniform(k_box, (3, 5), dtype=jnp.float32)

    flip_fn = jax.jit(horizontal_flip, static_argnames=("p",))

    # 1) Force the flip path (p=1.0) so the Pallas kernel definitely runs.
    out_img, out_boxes, flag = flip_fn(img, bboxes, p=1.0, key=k_flip)
    out_img = jax.block_until_ready(out_img)
    out_boxes = jax.block_until_ready(out_boxes)
    assert bool(flag), "p=1.0 must always flip"
    ref_img = jnp.flip(img, axis=-1)
    ref_boxes = bboxes.at[:, 1].set(1.0 - bboxes[:, 1])
    assert jnp.allclose(out_img, ref_img, atol=1e-5), "image flip mismatch"
    assert jnp.allclose(out_boxes, ref_boxes, atol=1e-6), "bbox flip mismatch"

    # 2) Default probabilistic behaviour (p=0.5), matching the module.
    out_img2, out_boxes2, flag2 = flip_fn(img, bboxes, p=0.5, key=k_flip)
    out_img2 = jax.block_until_ready(out_img2)
    out_boxes2 = jax.block_until_ready(out_boxes2)
    if bool(flag2):
        ref_img2, ref_boxes2 = ref_img, ref_boxes
    else:
        ref_img2, ref_boxes2 = img, bboxes
    assert jnp.allclose(out_img2, ref_img2, atol=1e-5), "image (p=0.5) mismatch"
    assert jnp.allclose(out_boxes2, ref_boxes2, atol=1e-6), "bbox (p=0.5) mismatch"

    print("KERNEL_OK")
</pallas_src>

<mosaic_0001>
module attributes {stable_mosaic.version = 11 : i64} {
  func.func @_flip_matmul_kernel(%arg0: i32, %arg1: i32, %arg2: memref<16x128xf32, #tpu.memory_space<vmem>>, %arg3: memref<128x128xf32, #tpu.memory_space<vmem>>, %arg4: memref<16x128xf32, #tpu.memory_space<vmem>>) attributes {dimension_semantics = [#tpu.dimension_semantics<parallel>, #tpu.dimension_semantics<parallel>], iteration_bounds = array<i64: 1, 1>, scalar_prefetch = 0 : i64, scratch_operands = 0 : i64, tpu.core_type = #tpu.core_type<tc>, window_params = [{transform_indices = @transform_0, window_bounds = array<i64: 16, 128>}, {pipeline_mode = #tpu.pipeline_mode<synchronous>, transform_indices = @transform_1, window_bounds = array<i64: 128, 128>}, {transform_indices = @transform_2, window_bounds = array<i64: 16, 128>}]} {
    %c0 = arith.constant 0 : index
    %c0_0 = arith.constant 0 : index
    %0 = vector.load %arg2[%c0, %c0_0] : memref<16x128xf32, #tpu.memory_space<vmem>>, vector<16x128xf32>
    %c0_1 = arith.constant 0 : index
    %c0_2 = arith.constant 0 : index
    %1 = vector.load %arg3[%c0_1, %c0_2] : memref<128x128xf32, #tpu.memory_space<vmem>>, vector<128x128xf32>
    %cst = arith.constant dense<0.000000e+00> : vector<16x128xf32>
    %2 = tpu.matmul %0, %1, %cst {dimension_numbers = #tpu.dot_dimension_numbers<[1], [0], [0], [1], [0, 0, 1, 1], [], []>} : vector<16x128xf32>, vector<128x128xf32>, vector<16x128xf32> -> vector<16x128xf32>
    %c0_3 = arith.constant 0 : index
    %c0_4 = arith.constant 0 : index
    %3 = vector.load %arg4[%c0_3, %c0_4] : memref<16x128xf32, #tpu.memory_space<vmem>>, vector<16x128xf32>
    tpu.vector_store %arg4[%c0_3, %c0_4], %2 {strides = array<i32>} : memref<16x128xf32, #tpu.memory_space<vmem>>, vector<16x128xf32>,
    return
  }
  func.func @transform_0(%arg0: i32, %arg1: i32) -> (i32, i32) {
    %c0_i32 = arith.constant 0 : i32
    return %arg0, %arg1 : i32, i32
  }
  func.func @transform_1(%arg0: i32, %arg1: i32) -> (i32, i32) {
    %c0_i32 = arith.constant 0 : i32
    %c0_i32_0 = arith.constant 0 : i32
    %c0_i32_1 = arith.constant 0 : i32
    return %c0_i32, %c0_i32_0 : i32, i32
  }
  func.func @transform_2(%arg0: i32, %arg1: i32) -> (i32, i32) {
    %c0_i32 = arith.constant 0 : i32
    return %arg0, %arg1 : i32, i32
  }
}

</mosaic_0001>

<llo_original>
// kernel: branch_1_fun.1
$region0: #{branch_1_fun.1}
  #allocation0 [shape = 'u32[]', space=smem, size = 0x4, offset = 0x4, fixed_abs, tag = 'smem constant byte address 0x4 - core index']
  #allocation1 [shape = 'u32[144,128]{1,0:T(1,128)}', space=vmem, size = 0x12000, scoped, tag = 'internal scratch']
  %s0 = inlined_call_operand.vmem [shape: f32[16,128], index: 0, kind: input, shape index: {}]
  %s1 = inlined_call_operand.vmem [shape: f32[128,128], index: 1, kind: input, shape index: {}]
  %s2 = inlined_call_operand.vmem [shape: f32[16,128], index: 2, kind: output, shape index: {}]
  %s3 = sld [smem:[#allocation0]]
  $region18: #{branch_1_fun.1} parent=0
    _
  %s5 = ssub.s32 1, %s3
  %s6 = scalar_select 0, %s5, %s3
  // Predicated region
  $region2: #{branch_1_fun.1} parent=0 // pred_check
    _
  $region3: #{branch_1_fun.1} parent=0 // pred_check_branch
    %8 = sbr.rel (0) target = $region5
  $region4: #{branch_1_fun.1} parent=0 // pred_region
    _
  $region5: #{branch_1_fun.1} parent=0 // pred_fallthru
    _
  // Predicated region
  $region6: #{branch_1_fun.1} parent=0 // pred_check
    _
  $region7: #{branch_1_fun.1} parent=0 // pred_check_branch
    %10 = sbr.rel (0) target = $region9
  $region8: #{branch_1_fun.1} parent=0 // pred_region
    _
  $region9: #{branch_1_fun.1} parent=0 // pred_fallthru
    _
  %v11 = vld [vmem:[%s0] sm:$0xff]
  %v12 = vld [vmem:[%s0 + $0x8] sm:$0xff]
  %v13 = vld [vmem:[%s1] sm:$0xff]
  %v14 = vld [vmem:[%s1 + $0x8] sm:$0xff]
  %v15 = vld [vmem:[%s1 + $0x10] sm:$0xff]
  %v16 = vld [vmem:[%s1 + $0x18] sm:$0xff]
  %v17 = vld [vmem:[%s1 + $0x20] sm:$0xff]
  %v18 = vld [vmem:[%s1 + $0x28] sm:$0xff]
  %v19 = vld [vmem:[%s1 + $0x30] sm:$0xff]
  %v20 = vld [vmem:[%s1 + $0x38] sm:$0xff]
  %v21 = vld [vmem:[%s1 + $0x40] sm:$0xff]
  %v22 = vld [vmem:[%s1 + $0x48] sm:$0xff]
  %v23 = vld [vmem:[%s1 + $0x50] sm:$0xff]
  %v24 = vld [vmem:[%s1 + $0x58] sm:$0xff]
  %v25 = vld [vmem:[%s1 + $0x60] sm:$0xff]
  %v26 = vld [vmem:[%s1 + $0x68] sm:$0xff]
  %v27 = vld [vmem:[%s1 + $0x70] sm:$0xff]
  %v28 = vld [vmem:[%s1 + $0x78] sm:$0xff]
  %29 = vmatprep.subr.mxu0 0.0
  %30 = vmatpush1.msra.mxu0 %v13
  %31 = vmatprep.subr.mxu0 0.0
  %32 = vmatpush1.msra.mxu0 %v14
  %33 = vmatprep.subr.mxu0 0.0
  %34 = vmatpush1.msra.mxu0 %v15
  %35 = vmatprep.subr.mxu0 0.0
  %36 = vmatpush1.msra.mxu0 %v16
  %37 = vmatprep.subr.mxu0 0.0
  %38 = vmatpush1.msra.mxu0 %v17
  %39 = vmatprep.subr.mxu0 0.0
  %40 = vmatpush1.msra.mxu0 %v18
  %41 = vmatprep.subr.mxu0 0.0
  %42 = vmatpush1.msra.mxu0 %v19
  %43 = vmatprep.subr.mxu0 0.0
  %44 = vmatpush1.msra.mxu0 %v20
  %45 = vmatprep.subr.mxu0 0.0
  %46 = vmatpush1.msra.mxu0 %v21
  %47 = vmatprep.subr.mxu0 0.0
  %48 = vmatpush1.msra.mxu0 %v22
  %49 = vmatprep.subr.mxu0 0.0
  %50 = vmatpush1.msra.mxu0 %v23
  %51 = vmatprep.subr.mxu0 0.0
  %52 = vmatpush1.msra.mxu0 %v24
  %53 = vmatprep.subr.mxu0 0.0
  %54 = vmatpush1.msra.mxu0 %v25
  %55 = vmatprep.subr.mxu0 0.0
  %56 = vmatpush1.msra.mxu0 %v26
  %57 = vmatprep.subr.mxu0 0.0
  %58 = vmatpush1.msra.mxu0 %v27
  %59 = vmatprep.subr.mxu0 0.0
  %60 = vmatpush1.msra.mxu0 %v28
  %61 = vmatprep.subr.mxu0 0.0
  %62 = vmatpush1.msra.mxu0 0.0
  %63 = vmatprep.subr.mxu0 0.0
  %64 = vmatpush1.msra.mxu0 0.0
  %65 = vmatprep.subr.mxu0 0.0
  %66 = vmatpush1.msra.mxu0 0.0
  %67 = vmatprep.subr.mxu0 0.0
  %68 = vmatpush1.msra.mxu0 0.0
  %69 = vmatprep.subr.mxu0 0.0
  %70 = vmatpush1.msra.mxu0 0.0
  %71 = vmatprep.subr.mxu0 0.0
  %72 = vmatpush1.msra.mxu0 0.0
  %73 = vmatprep.subr.mxu0 0.0
  %74 = vmatpush1.msra.mxu0 0.0
  %75 = vmatprep.subr.mxu0 0.0
  %76 = vmatpush1.msra.mxu0 0.0
  %77 = vmatprep.subr.mxu0 0.0
  %78 = vmatpush1.msra.mxu0 0.0
  %79 = vmatprep.subr.mxu0 0.0
  %80 = vmatpush1.msra.mxu0 0.0
  %81 = vmatprep.subr.mxu0 0.0
  %82 = vmatpush1.msra.mxu0 0.0
  %83 = vmatprep.subr.mxu0 0.0
  %84 = vmatpush1.msra.mxu0 0.0
  %85 = vmatprep.subr.mxu0 0.0
  %86 = vmatpush1.msra.mxu0 0.0
  %87 = vmatprep.subr.mxu0 0.0
  %88 = vmatpush1.msra.mxu0 0.0
  %89 = vmatprep.subr.mxu0 0.0
  %90 = vmatpush1.msra.mxu0 0.0
  %91 = vmatprep.subr.mxu0 0.0
  %92 = vmatpush1.msra.mxu0 0.0
  %93 = vmatprep.mubr.f32.mxu0 0.0
  %94 = vmatmul.mubr.f32.gmra.mrb[0].mxu0 %v11
  %v95 = vpop.f32.mrb[0].mxu0
  %v96 = vadd.f32 0.0, %v95
  %v97 = vpop.f32.mrb[0].mxu0
  %98 = vmatprep.mubr.f32.mxu0 0.0
  %99 = vmatmul.mubr.f32.gmra.mrb[0].mxu0 %v12
  %v100 = vpop.f32.mrb[0].mxu0
  %v101 = vadd.f32 0.0, %v100
  %v102 = vpop.f32.mrb[0].mxu0
  %103 = vdwg.mxu0
  %104 = vst [vmem:[%s2] sm:$0xff] %v96
  %105 = vst [vmem:[%s2 + $0x8] sm:$0xff] %v101
  // Predicated region
  $region10: #{branch_1_fun.1} parent=0 // pred_check
    _
  $region11: #{branch_1_fun.1} parent=0 // pred_check_branch
    %107 = sbr.rel (0) target = $region13
  $region12: #{branch_1_fun.1} parent=0 // pred_region
    _
  $region13: #{branch_1_fun.1} parent=0 // pred_fallthru
    _
  // Predicated region
  $region14: #{branch_1_fun.1} parent=0 // pred_check
    _
  $region15: #{branch_1_fun.1} parent=0 // pred_check_branch
    %109 = sbr.rel (0) target = $region17
  $region16: #{branch_1_fun.1} parent=0 // pred_region
    _
  $region17: #{branch_1_fun.1} parent=0 // pred_fallthru
    _

</llo_original>
